<compile_context>
chip_gen: v6e
topology: v6e:2x2x1
jax: 0.10.0
libtpu: 0.0.40
codegen_flags: <defaults>
</compile_context>

<pallas_src>
import functools

import jax
import jax.numpy as jnp
from jax.experimental import pallas as pl
from jax.experimental.pallas import tpu as pltpu

_LN_EPS = 1e-5  # nn.LayerNorm default


def _round_up(n, m):
    return ((n + m - 1) // m) * m


# ----------------------------------------------------------------------------
# Kernel
# ----------------------------------------------------------------------------
def actor_kernel(x_ref, w_ref, v_ref, out_ref, *, dims):
    in_dims, fc1, fc2, fc3, n_act, w_offs, lane = dims
    o1, o2, o3, o4 = w_offs

    x = x_ref[...].astype(jnp.float32)

    def layer(h, w, b, g, beta, width):
        # Linear -> LayerNorm (biased var, eps inside rsqrt) -> ReLU.
        z = jnp.dot(h, w, preferred_element_type=jnp.float32) + b
        inv_n = jnp.float32(1.0 / width)
        s = jnp.sum(z, axis=-1, keepdims=True)
        s2 = jnp.sum(z * z, axis=-1, keepdims=True)
        mean = s * inv_n
        var = jnp.maximum(s2 * inv_n - mean * mean, 0.0)  # one-pass stats, f32
        z = (z - mean) * jax.lax.rsqrt(var + _LN_EPS)
        return jnp.maximum(z * g + beta, 0.0)

    h = layer(x, w_ref[o1:o1 + in_dims, 0:fc1],
              v_ref[0:1, 0:fc1], v_ref[1:2, 0:fc1], v_ref[2:3, 0:fc1], fc1)
    h = layer(h, w_ref[o2:o2 + fc1, 0:fc2],
              v_ref[3:4, 0:fc2], v_ref[4:5, 0:fc2], v_ref[5:6, 0:fc2], fc2)
    h = layer(h, w_ref[o3:o3 + fc2, 0:fc3],
              v_ref[6:7, 0:fc3], v_ref[7:8, 0:fc3], v_ref[8:9, 0:fc3], fc3)

    # Final linear in the full padded lane width (wmu/bmu are zero beyond
    # n_actions, tanh(0)=0) -> lane-dense, unmasked store.
    mu = (jnp.dot(h, w_ref[o4:o4 + fc3, :], preferred_element_type=jnp.float32)
          + v_ref[9:10, :])
    out_ref[...] = jnp.tanh(mu).astype(out_ref.dtype)


# ----------------------------------------------------------------------------
# Parameter packing (done once, outside the hot path)
# ----------------------------------------------------------------------------
def pack_actor_params(params):
    """Pack weights into one lane-dense slab and all vectors into another."""
    in_dims, fc1 = params["w1"].shape
    fc2 = params["w2"].shape[1]
    fc3 = params["w3"].shape[1]
    n_act = params["wmu"].shape[1]

    lane = _round_up(max(fc1, fc2, fc3, n_act, 128), 128)

    weights = [params["w1"], params["w2"], params["w3"], params["wmu"]]
    pieces, offs, off = [], [], 0
    for w in weights:
        rows = _round_up(w.shape[0], 8)  # keep each weight 8-sublane aligned
        pieces.append(jnp.pad(
            w.astype(jnp.float32),
            ((0, rows - w.shape[0]), (0, lane - w.shape[1]))))
        offs.append(off)
        off += rows
    wslab = jnp.concatenate(pieces, axis=0)

    vecs = [params["b1"], params["g1"], params["be1"],
            params["b2"], params["g2"], params["be2"],
            params["b3"], params["g3"], params["be3"],
            params["bmu"]]
    vrows = [jnp.pad(v.reshape(1, -1).astype(jnp.float32),
                     ((0, 0), (0, lane - v.shape[-1]))) for v in vecs]
    vslab = jnp.concatenate(vrows, axis=0)
    vslab = jnp.pad(vslab, ((0, _round_up(len(vecs), 8) - len(vecs)), (0, 0)))

    dims = (in_dims, fc1, fc2, fc3, n_act, tuple(offs), lane)
    return wslab, vslab, dims


# ----------------------------------------------------------------------------
# Forward wrapper
# ----------------------------------------------------------------------------
@functools.partial(jax.jit, static_argnames=("dims",))
def actor_forward(x, wslab, vslab, dims):
    in_dims, fc1, fc2, fc3, n_act, _w_offs, lane = dims
    batch = x.shape[0]

    # Batch tiling: one grid step per block_batch rows; "parallel" so v7x can
    # shard the batch axis across its 2 TensorCores (neutral on v5e/v6e).
    block_batch = min(_round_up(batch, 8), 256)
    padded_batch = _round_up(batch, block_batch)
    xp = x if padded_batch == batch else jnp.pad(
        x, ((0, padded_batch - batch), (0, 0)))

    kernel = functools.partial(actor_kernel, dims=dims)

    flops = 2 * padded_batch * (in_dims * fc1 + fc1 * fc2 + fc2 * fc3 + fc3 * lane)
    transcendentals = padded_batch * (3 + lane)  # 3 rsqrt rows + tanh lanes
    bytes_accessed = 4 * (padded_batch * in_dims + int(wslab.size)
                          + int(vslab.size) + padded_batch * lane)

    out = pl.pallas_call(
        kernel,
        out_shape=jax.ShapeDtypeStruct((padded_batch, lane), jnp.float32),
        grid_spec=pltpu.PrefetchScalarGridSpec(
            num_scalar_prefetch=0,
            grid=(padded_batch // block_batch,),
            in_specs=[
                pl.BlockSpec((block_batch, in_dims), lambda i: (i, 0)),
                pl.BlockSpec(wslab.shape, lambda i: (0, 0)),   # replicated
                pl.BlockSpec(vslab.shape, lambda i: (0, 0)),   # replicated
            ],
            out_specs=pl.BlockSpec((block_batch, lane), lambda i: (i, 0)),
        ),
        compiler_params=pltpu.CompilerParams(
            dimension_semantics=("parallel",)),
        cost_estimate=pl.CostEstimate(
            flops=flops, transcendentals=transcendentals,
            bytes_accessed=bytes_accessed),
    )(xp, wslab, vslab)

    return out[:batch, :n_act]


# ----------------------------------------------------------------------------
# Init + pure-JAX reference (mirrors the PyTorch module)
# ----------------------------------------------------------------------------
def init_actor_params(key, input_dims, fc1_dims, fc2_dims, fc3_dims, n_actions):
    ks = jax.random.split(key, 8)

    def unif(k, shape, bound):
        return jax.random.uniform(k, shape, dtype=jnp.float32,
                                  minval=-bound, maxval=bound)

    f1 = 1.0 / jnp.sqrt(jnp.float32(input_dims))
    f2 = 1.0 / jnp.sqrt(jnp.float32(fc1_dims))
    f3 = 1.0 / jnp.sqrt(jnp.float32(fc2_dims))
    f4 = 0.003

    return {
        # weights stored (in, out) = PyTorch weight.T
        "w1": unif(ks[0], (input_dims, fc1_dims), f1),
        "b1": unif(ks[1], (1, fc1_dims), f1),
        "w2": unif(ks[2], (fc1_dims, fc2_dims), f2),
        "b2": unif(ks[3], (1, fc2_dims), f2),
        "w3": unif(ks[4], (fc2_dims, fc3_dims), f3),
        "b3": unif(ks[5], (1, fc3_dims), f3),
        "wmu": unif(ks[6], (fc3_dims, n_actions), f4),
        "bmu": unif(ks[7], (1, n_actions), f4),
        # LayerNorm defaults: weight=1, bias=0
        "g1": jnp.ones((1, fc1_dims), jnp.float32),
        "be1": jnp.zeros((1, fc1_dims), jnp.float32),
        "g2": jnp.ones((1, fc2_dims), jnp.float32),
        "be2": jnp.zeros((1, fc2_dims), jnp.float32),
        "g3": jnp.ones((1, fc3_dims), jnp.float32),
        "be3": jnp.zeros((1, fc3_dims), jnp.float32),
    }


def actor_forward_ref(x, params):
    def layer(h, w, b, g, be):
        h = h @ w + b
        mean = jnp.mean(h, axis=-1, keepdims=True)
        var = jnp.mean((h - mean) ** 2, axis=-1, keepdims=True)
        h = (h - mean) / jnp.sqrt(var + _LN_EPS)
        return jnp.maximum(h * g + be, 0.0)

    h = layer(x, params["w1"], params["b1"], params["g1"], params["be1"])
    h = layer(h, params["w2"], params["b2"], params["g2"], params["be2"])
    h = layer(h, params["w3"], params["b3"], params["g3"], params["be3"])
    return jnp.tanh(h @ params["wmu"] + params["bmu"])


# TODO(synk): optimizer / checkpoint save-load from the PyTorch module are
# host-side training utilities, not part of the forward pass; not translated.

if __name__ == "__main__":
    batch = 8
    input_dims = 16
    fc1_dims, fc2_dims, fc3_dims = 32, 32, 32
    n_actions = 8

    key = jax.random.PRNGKey(0)
    k_x, k_p = jax.random.split(key)

    x = jax.random.normal(k_x, (batch, input_dims), dtype=jnp.float32)
    params = init_actor_params(k_p, input_dims, fc1_dims, fc2_dims,
                               fc3_dims, n_actions)

    wslab, vslab, dims = pack_actor_params(params)

    out = actor_forward(x, wslab, vslab, dims)
    out = jax.block_until_ready(out)

    ref = actor_forward_ref(x, params)
    assert out.shape == (batch, n_actions)
    assert jnp.allclose(out, ref, atol=1e-5, rtol=1e-5), "mismatch vs JAX reference"

    print("KERNEL_OK")
</pallas_src>

<mosaic_0001>
module attributes {stable_mosaic.version = 11 : i64} {
  func.func @actor_kernel(%arg0: i32, %arg1: memref<8x16xf32, #tpu.memory_space<vmem>>, %arg2: memref<112x128xf32, #tpu.memory_space<vmem>>, %arg3: memref<16x128xf32, #tpu.memory_space<vmem>>, %arg4: memref<8x128xf32, #tpu.memory_space<vmem>>) attributes {dimension_semantics = [#tpu.dimension_semantics<parallel>], iteration_bounds = array<i64: 1>, scalar_prefetch = 0 : i64, scratch_operands = 0 : i64, tpu.core_type = #tpu.core_type<tc>, window_params = [{transform_indices = @transform_0, window_bounds = array<i64: 8, 16>}, {pipeline_mode = #tpu.pipeline_mode<synchronous>, transform_indices = @transform_1, window_bounds = array<i64: 112, 128>}, {pipeline_mode = #tpu.pipeline_mode<synchronous>, transform_indices = @transform_2, window_bounds = array<i64: 16, 128>}, {transform_indices = @transform_3, window_bounds = array<i64: 8, 128>}]} {
    %c0 = arith.constant 0 : index
    %c0_0 = arith.constant 0 : index
    %0 = vector.load %arg1[%c0, %c0_0] : memref<8x16xf32, #tpu.memory_space<vmem>>, vector<8x16xf32>
    %c0_1 = arith.constant 0 : index
    %c0_2 = arith.constant 0 : index
    %1 = vector.load %arg2[%c0_1, %c0_2] : memref<112x128xf32, #tpu.memory_space<vmem>>, vector<16x32xf32>
    %c0_3 = arith.constant 0 : index
    %c0_4 = arith.constant 0 : index
    %2 = vector.load %arg3[%c0_3, %c0_4] : memref<16x128xf32, #tpu.memory_space<vmem>>, vector<1x32xf32>
    %c1 = arith.constant 1 : index
    %c0_5 = arith.constant 0 : index
    %3 = vector.load %arg3[%c1, %c0_5] : memref<16x128xf32, #tpu.memory_space<vmem>>, vector<1x32xf32>
    %c2 = arith.constant 2 : index
    %c0_6 = arith.constant 0 : index
    %4 = vector.load %arg3[%c2, %c0_6] : memref<16x128xf32, #tpu.memory_space<vmem>>, vector<1x32xf32>
    %cst = arith.constant dense<0.000000e+00> : vector<8x32xf32>
    %5 = tpu.matmul %0, %1, %cst {dimension_numbers = #tpu.dot_dimension_numbers<[1], [0], [0], [1], [0, 0, 1, 1], [], []>} : vector<8x16xf32>, vector<16x32xf32>, vector<8x32xf32> -> vector<8x32xf32>
    %6 = vector.broadcast %2 : vector<1x32xf32> to vector<8x32xf32>
    %7 = arith.addf %5, %6 : vector<8x32xf32>
    %cst_7 = arith.constant dense<0.000000e+00> : vector<8xf32>
    %8 = vector.multi_reduction <add>, %7, %cst_7 [1] : vector<8x32xf32> to vector<8xf32>
    %9 = vector.shape_cast %8 : vector<8xf32> to vector<8x1xf32>
    %10 = arith.mulf %7, %7 : vector<8x32xf32>
    %cst_8 = arith.constant dense<0.000000e+00> : vector<8xf32>
    %11 = vector.multi_reduction <add>, %10, %cst_8 [1] : vector<8x32xf32> to vector<8xf32>
    %12 = vector.shape_cast %11 : vector<8xf32> to vector<8x1xf32>
    %cst_9 = arith.constant 3.125000e-02 : f32
    %13 = vector.broadcast %cst_9 : f32 to vector<8x1xf32>
    %14 = arith.mulf %9, %13 : vector<8x1xf32>
    %cst_10 = arith.constant 3.125000e-02 : f32
    %15 = vector.broadcast %cst_10 : f32 to vector<8x1xf32>
    %16 = arith.mulf %12, %15 : vector<8x1xf32>
    %17 = arith.mulf %14, %14 : vector<8x1xf32>
    %18 = arith.subf %16, %17 : vector<8x1xf32>
    %cst_11 = arith.constant 0.000000e+00 : f32
    %19 = vector.broadcast %cst_11 : f32 to vector<8x1xf32>
    %20 = arith.maximumf %18, %19 : vector<8x1xf32>
    %21 = vector.broadcast %14 : vector<8x1xf32> to vector<8x32xf32>
    %22 = arith.subf %7, %21 : vector<8x32xf32>
    %cst_12 = arith.constant 9.99999974E-6 : f32
    %23 = vector.broadcast %cst_12 : f32 to vector<8x1xf32>
    %24 = arith.addf %20, %23 : vector<8x1xf32>
    %25 = math.rsqrt %24 : vector<8x1xf32>
    %26 = vector.broadcast %25 : vector<8x1xf32> to vector<8x32xf32>
    %27 = arith.mulf %22, %26 : vector<8x32xf32>
    %28 = vector.broadcast %3 : vector<1x32xf32> to vector<8x32xf32>
    %29 = arith.mulf %27, %28 : vector<8x32xf32>
    %30 = vector.broadcast %4 : vector<1x32xf32> to vector<8x32xf32>
    %31 = arith.addf %29, %30 : vector<8x32xf32>
    %cst_13 = arith.constant 0.000000e+00 : f32
    %32 = vector.broadcast %cst_13 : f32 to vector<8x32xf32>
    %33 = arith.maximumf %31, %32 : vector<8x32xf32>
    %c16 = arith.constant 16 : index
    %c0_14 = arith.constant 0 : index
    %34 = vector.load %arg2[%c16, %c0_14] : memref<112x128xf32, #tpu.memory_space<vmem>>, vector<32x32xf32>
    %c3 = arith.constant 3 : index
    %c0_15 = arith.constant 0 : index
    %35 = vector.load %arg3[%c3, %c0_15] : memref<16x128xf32, #tpu.memory_space<vmem>>, vector<1x32xf32>
    %c4 = arith.constant 4 : index
    %c0_16 = arith.constant 0 : index
    %36 = vector.load %arg3[%c4, %c0_16] : memref<16x128xf32, #tpu.memory_space<vmem>>, vector<1x32xf32>
    %c5 = arith.constant 5 : index
    %c0_17 = arith.constant 0 : index
    %37 = vector.load %arg3[%c5, %c0_17] : memref<16x128xf32, #tpu.memory_space<vmem>>, vector<1x32xf32>
    %cst_18 = arith.constant dense<0.000000e+00> : vector<8x32xf32>
    %38 = tpu.matmul %33, %34, %cst_18 {dimension_numbers = #tpu.dot_dimension_numbers<[1], [0], [0], [1], [0, 0, 1, 1], [], []>} : vector<8x32xf32>, vector<32x32xf32>, vector<8x32xf32> -> vector<8x32xf32>
    %39 = vector.broadcast %35 : vector<1x32xf32> to vector<8x32xf32>
    %40 = arith.addf %38, %39 : vector<8x32xf32>
    %cst_19 = arith.constant dense<0.000000e+00> : vector<8xf32>
    %41 = vector.multi_reduction <add>, %40, %cst_19 [1] : vector<8x32xf32> to vector<8xf32>
    %42 = vector.shape_cast %41 : vector<8xf32> to vector<8x1xf32>
    %43 = arith.mulf %40, %40 : vector<8x32xf32>
    %cst_20 = arith.constant dense<0.000000e+00> : vector<8xf32>
    %44 = vector.multi_reduction <add>, %43, %cst_20 [1] : vector<8x32xf32> to vector<8xf32>
    %45 = vector.shape_cast %44 : vector<8xf32> to vector<8x1xf32>
    %cst_21 = arith.constant 3.125000e-02 : f32
    %46 = vector.broadcast %cst_21 : f32 to vector<8x1xf32>
    %47 = arith.mulf %42, %46 : vector<8x1xf32>
    %cst_22 = arith.constant 3.125000e-02 : f32
    %48 = vector.broadcast %cst_22 : f32 to vector<8x1xf32>
    %49 = arith.mulf %45, %48 : vector<8x1xf32>
    %50 = arith.mulf %47, %47 : vector<8x1xf32>
    %51 = arith.subf %49, %50 : vector<8x1xf32>
    %cst_23 = arith.constant 0.000000e+00 : f32
    %52 = vector.broadcast %cst_23 : f32 to vector<8x1xf32>
    %53 = arith.maximumf %51, %52 : vector<8x1xf32>
    %54 = vector.broadcast %47 : vector<8x1xf32> to vector<8x32xf32>
    %55 = arith.subf %40, %54 : vector<8x32xf32>
    %cst_24 = arith.constant 9.99999974E-6 : f32
    %56 = vector.broadcast %cst_24 : f32 to vector<8x1xf32>
    %57 = arith.addf %53, %56 : vector<8x1xf32>
    %58 = math.rsqrt %57 : vector<8x1xf32>
    %59 = vector.broadcast %58 : vector<8x1xf32> to vector<8x32xf32>
    %60 = arith.mulf %55, %59 : vector<8x32xf32>
    %61 = vector.broadcast %36 : vector<1x32xf32> to vector<8x32xf32>
    %62 = arith.mulf %60, %61 : vector<8x32xf32>
    %63 = vector.broadcast %37 : vector<1x32xf32> to vector<8x32xf32>
    %64 = arith.addf %62, %63 : vector<8x32xf32>
    %cst_25 = arith.constant 0.000000e+00 : f32
    %65 = vector.broadcast %cst_25 : f32 to vector<8x32xf32>
    %66 = arith.maximumf %64, %65 : vector<8x32xf32>
    %c48 = arith.constant 48 : index
    %c0_26 = arith.constant 0 : index
    %67 = vector.load %arg2[%c48, %c0_26] : memref<112x128xf32, #tpu.memory_space<vmem>>, vector<32x32xf32>
    %c6 = arith.constant 6 : index
    %c0_27 = arith.constant 0 : index
    %68 = vector.load %arg3[%c6, %c0_27] : memref<16x128xf32, #tpu.memory_space<vmem>>, vector<1x32xf32>
    %c7 = arith.constant 7 : index
    %c0_28 = arith.constant 0 : index
    %69 = vector.load %arg3[%c7, %c0_28] : memref<16x128xf32, #tpu.memory_space<vmem>>, vector<1x32xf32>
    %c8 = arith.constant 8 : index
    %c0_29 = arith.constant 0 : index
    %70 = vector.load %arg3[%c8, %c0_29] : memref<16x128xf32, #tpu.memory_space<vmem>>, vector<1x32xf32>
    %cst_30 = arith.constant dense<0.000000e+00> : vector<8x32xf32>
    %71 = tpu.matmul %66, %67, %cst_30 {dimension_numbers = #tpu.dot_dimension_numbers<[1], [0], [0], [1], [0, 0, 1, 1], [], []>} : vector<8x32xf32>, vector<32x32xf32>, vector<8x32xf32> -> vector<8x32xf32>
    %72 = vector.broadcast %68 : vector<1x32xf32> to vector<8x32xf32>
    %73 = arith.addf %71, %72 : vector<8x32xf32>
    %cst_31 = arith.constant dense<0.000000e+00> : vector<8xf32>
    %74 = vector.multi_reduction <add>, %73, %cst_31 [1] : vector<8x32xf32> to vector<8xf32>
    %75 = vector.shape_cast %74 : vector<8xf32> to vector<8x1xf32>
    %76 = arith.mulf %73, %73 : vector<8x32xf32>
    %cst_32 = arith.constant dense<0.000000e+00> : vector<8xf32>
    %77 = vector.multi_reduction <add>, %76, %cst_32 [1] : vector<8x32xf32> to vector<8xf32>
    %78 = vector.shape_cast %77 : vector<8xf32> to vector<8x1xf32>
    %cst_33 = arith.constant 3.125000e-02 : f32
    %79 = vector.broadcast %cst_33 : f32 to vector<8x1xf32>
    %80 = arith.mulf %75, %79 : vector<8x1xf32>
    %cst_34 = arith.constant 3.125000e-02 : f32
    %81 = vector.broadcast %cst_34 : f32 to vector<8x1xf32>
    %82 = arith.mulf %78, %81 : vector<8x1xf32>
    %83 = arith.mulf %80, %80 : vector<8x1xf32>
    %84 = arith.subf %82, %83 : vector<8x1xf32>
    %cst_35 = arith.constant 0.000000e+00 : f32
    %85 = vector.broadcast %cst_35 : f32 to vector<8x1xf32>
    %86 = arith.maximumf %84, %85 : vector<8x1xf32>
    %87 = vector.broadcast %80 : vector<8x1xf32> to vector<8x32xf32>
    %88 = arith.subf %73, %87 : vector<8x32xf32>
    %cst_36 = arith.constant 9.99999974E-6 : f32
    %89 = vector.broadcast %cst_36 : f32 to vector<8x1xf32>
    %90 = arith.addf %86, %89 : vector<8x1xf32>
    %91 = math.rsqrt %90 : vector<8x1xf32>
    %92 = vector.broadcast %91 : vector<8x1xf32> to vector<8x32xf32>
    %93 = arith.mulf %88, %92 : vector<8x32xf32>
    %94 = vector.broadcast %69 : vector<1x32xf32> to vector<8x32xf32>
    %95 = arith.mulf %93, %94 : vector<8x32xf32>
    %96 = vector.broadcast %70 : vector<1x32xf32> to vector<8x32xf32>
    %97 = arith.addf %95, %96 : vector<8x32xf32>
    %cst_37 = arith.constant 0.000000e+00 : f32
    %98 = vector.broadcast %cst_37 : f32 to vector<8x32xf32>
    %99 = arith.maximumf %97, %98 : vector<8x32xf32>
    %c80 = arith.constant 80 : index
    %c0_38 = arith.constant 0 : index
    %100 = vector.load %arg2[%c80, %c0_38] : memref<112x128xf32, #tpu.memory_space<vmem>>, vector<32x128xf32>
    %cst_39 = arith.constant dense<0.000000e+00> : vector<8x128xf32>
    %101 = tpu.matmul %99, %100, %cst_39 {dimension_numbers = #tpu.dot_dimension_numbers<[1], [0], [0], [1], [0, 0, 1, 1], [], []>} : vector<8x32xf32>, vector<32x128xf32>, vector<8x128xf32> -> vector<8x128xf32>
    %c9 = arith.constant 9 : index
    %c0_40 = arith.constant 0 : index
    %102 = vector.load %arg3[%c9, %c0_40] : memref<16x128xf32, #tpu.memory_space<vmem>>, vector<1x128xf32>
    %103 = vector.broadcast %102 : vector<1x128xf32> to vector<8x128xf32>
    %104 = arith.addf %101, %103 : vector<8x128xf32>
    %105 = math.tanh %104 : vector<8x128xf32>
    %c0_41 = arith.constant 0 : index
    %c0_42 = arith.constant 0 : index
    %106 = vector.load %arg4[%c0_41, %c0_42] : memref<8x128xf32, #tpu.memory_space<vmem>>, vector<8x128xf32>
    tpu.vector_store %arg4[%c0_41, %c0_42], %105 {strides = array<i32>} : memref<8x128xf32, #tpu.memory_space<vmem>>, vector<8x128xf32>,
    return
  }
  func.func @transform_0(%arg0: i32) -> (i32, i32) {
    %c0_i32 = arith.constant 0 : i32
    %c0_i32_0 = arith.constant 0 : i32
    return %arg0, %c0_i32 : i32, i32
  }
  func.func @transform_1(%arg0: i32) -> (i32, i32) {
    %c0_i32 = arith.constant 0 : i32
    %c0_i32_0 = arith.constant 0 : i32
    %c0_i32_1 = arith.constant 0 : i32
    return %c0_i32, %c0_i32_0 : i32, i32
  }
  func.func @transform_2(%arg0: i32) -> (i32, i32) {
    %c0_i32 = arith.constant 0 : i32
    %c0_i32_0 = arith.constant 0 : i32
    %c0_i32_1 = arith.constant 0 : i32
    return %c0_i32, %c0_i32_0 : i32, i32
  }
  func.func @transform_3(%arg0: i32) -> (i32, i32) {
    %c0_i32 = arith.constant 0 : i32
    %c0_i32_0 = arith.constant 0 : i32
    return %arg0, %c0_i32 : i32, i32
  }
}

</mosaic_0001>

<llo_original>
// kernel: actor_forward.1
$region0: #{actor_forward.1}
  #allocation0 [shape = 'u32[]', space=smem, size = 0x4, offset = 0x4, fixed_abs, tag = 'smem constant byte address 0x4 - core index']
  #allocation1 [shape = 'u32[144,128]{1,0:T(1,128)}', space=vmem, size = 0x12000, scoped, tag = 'internal scratch']
  %s0 = inlined_call_operand.hbm [shape: f32[8,16], index: 0, kind: input, shape index: {}]
  %s1 = inlined_call_operand.hbm [shape: f32[112,128], index: 1, kind: input, shape index: {}]
  %s2 = inlined_call_operand.hbm [shape: f32[16,128], index: 2, kind: input, shape index: {}]
  %s3 = inlined_call_operand.hbm [shape: f32[8,128], index: 3, kind: output, shape index: {}]
  %s4 = sld [smem:[#allocation0]]
  $region34: #{actor_forward.1} parent=0
    _
  %s6 = ssub.s32 1, %s4
  %s7 = scalar_select 0, %s6, %s4
  $region1: #{actor_forward.1} parent=0
    #allocation2 [shape = 'u8[4096]{0}', space=vmem, size = 0x1000, scoped, tag = 'input window, operand 0, single buffered']
    #allocation3 [shape = 's32[1]{0}', space=sflag, size = 0x4, scoped, tag = 'scoped memory for actor_forward.1']
    #allocation4 [shape = 's32[1]{0}', space=sflag, size = 0x4, scoped, tag = 'scoped memory for actor_forward.1']
    #allocation5 [shape = 'u8[57344]{0}', space=vmem, size = 0xe000, scoped, tag = 'input window, operand 1, single buffered']
    #allocation6 [shape = 's32[1]{0}', space=sflag, size = 0x4, scoped, tag = 'scoped memory for actor_forward.1']
    #allocation7 [shape = 'u8[8192]{0}', space=vmem, size = 0x2000, scoped, tag = 'input window, operand 2, single buffered']
    #allocation8 [shape = 'u8[4096]{0}', space=vmem, size = 0x1000, scoped, tag = 'output window, operand 0, single buffered']
    %8 = vsyncpa [#allocation3], 0
    %9 = vsyncpa [#allocation6], 0
    %10 = vsyncpa [#allocation4], 0
    // Predicated region
    $region2: #{actor_forward.1} parent=1 // pred_check
      _
    $region3: #{actor_forward.1} parent=1 // pred_check_branch
      %12 = sbr.rel (0) target = $region5
    $region4: #{actor_forward.1} parent=1 // pred_region
      %s14 = ssub.s32 128, 128
      %15 = vsyncadd [#allocation3], %s14
      %s17 = sshll.u32 [#allocation2], 4
      %s18 = int_to_ptr.vmem [resolvable:$true] %s17
      %20 = dma.hbm_to_vmem [thread:$0]  %s0, 128, %s18, [#allocation3]
    $region5: #{actor_forward.1} parent=1 // pred_fallthru
      _
    // Predicated region
    $region6: #{actor_forward.1} parent=1 // pred_check
      _
    $region7: #{actor_forward.1} parent=1 // pred_check_branch
      %22 = sbr.rel (0) target = $region9
    $region8: #{actor_forward.1} parent=1 // pred_region
      %s24 = ssub.s32 1792, 1792
      %25 = vsyncadd [#allocation6], %s24
      %s26 = sshll.u32 [#allocation5], 4
      %s27 = int_to_ptr.vmem [resolvable:$true] %s26
      %32 = dma.hbm_to_vmem [thread:$0]  %s1, 1792, %s27, [#allocation6], 128, 128, 8
    $region9: #{actor_forward.1} parent=1 // pred_fallthru
      _
    // Predicated region
    $region10: #{actor_forward.1} parent=1 // pred_check
      _
    $region11: #{actor_forward.1} parent=1 // pred_check_branch
      %34 = sbr.rel (0) target = $region13
    $region12: #{actor_forward.1} parent=1 // pred_region
      %s36 = ssub.s32 256, 256
      %37 = vsyncadd [#allocation6], %s36
      %s38 = sshll.u32 [#allocation7], 4
      %s39 = int_to_ptr.vmem [resolvable:$true] %s38
      %44 = dma.hbm_to_vmem [thread:$0]  %s2, 256, %s39, [#allocation6], 128, 128, 8
    $region13: #{actor_forward.1} parent=1 // pred_fallthru
      _
    // Predicated region
    $region14: #{actor_forward.1} parent=1 // pred_check
      _
    $region15: #{actor_forward.1} parent=1 // pred_check_branch
      %46 = sbr.rel (0) target = $region17
    $region16: #{actor_forward.1} parent=1 // pred_region
      %47 = dma.done [#allocation3], 128
    $region17: #{actor_forward.1} parent=1 // pred_fallthru
      _
    // Predicated region
    $region18: #{actor_forward.1} parent=1 // pred_check
      _
    $region19: #{actor_forward.1} parent=1 // pred_check_branch
      %49 = sbr.rel (0) target = $region21
    $region20: #{actor_forward.1} parent=1 // pred_region
      %50 = dma.done [#allocation6], 1792
    $region21: #{actor_forward.1} parent=1 // pred_fallthru
      _
    // Predicated region
    $region22: #{actor_forward.1} parent=1 // pred_check
      _
    $region23: #{actor_forward.1} parent=1 // pred_check_branch
      %52 = sbr.rel (0) target = $region25
    $region24: #{actor_forward.1} parent=1 // pred_region
      %53 = dma.done [#allocation6], 256
    $region25: #{actor_forward.1} parent=1 // pred_fallthru
      _
    %v54 = vld [vmem:[#allocation2] sm:$0xff]
    %v55 = vld [vmem:[#allocation5] sm:$0xff]
    %v56 = vld [vmem:[#allocation5 + $0x8] sm:$0xff]
    %v57 = vld [vmem:[#allocation7] sm:$0x1]
    %v58 = vld [vmem:[#allocation7 + $0x1] sm:$0x1]
    %v59 = vld [vmem:[#allocation7 + $0x2] sm:$0x1]
    %v60 = vlaneseq
    %v61 = vshrl.u32 %v60, 7
    %v62 = vsub.s32 0, %v61
    %v63 = vrot.slane %v57, %v62
    %vm64 = vcmask 130048
    %v66 = vsel %vm64, %v54, 0
    %68 = vmatprep.subr.mxu0 0.0
    %69 = vmatpush1.msra.mxu0 0.0
    %70 = vmatprep.subr.mxu0 0.0
    %71 = vmatpush1.msra.mxu0 0.0
    %72 = vmatprep.subr.mxu0 0.0
    %73 = vmatpush1.msra.mxu0 0.0
    %74 = vmatprep.subr.mxu0 0.0
    %75 = vmatpush1.msra.mxu0 0.0
    %76 = vmatprep.subr.mxu0 0.0
    %77 = vmatpush1.msra.mxu0 0.0
    %78 = vmatprep.subr.mxu0 0.0
    %79 = vmatpush1.msra.mxu0 0.0
    %80 = vmatprep.subr.mxu0 0.0
    %81 = vmatpush1.msra.mxu0 0.0
    %82 = vmatprep.subr.mxu0 0.0
    %83 = vmatpush1.msra.mxu0 0.0
    %84 = vmatprep.subr.mxu0 0.0
    %85 = vmatpush1.msra.mxu0 0.0
    %86 = vmatprep.subr.mxu0 0.0
    %87 = vmatpush1.msra.mxu0 0.0
    %88 = vmatprep.subr.mxu0 0.0
    %89 = vmatpush1.msra.mxu0 0.0
    %90 = vmatprep.subr.mxu0 0.0
    %91 = vmatpush1.msra.mxu0 0.0
    %92 = vmatprep.subr.mxu0 0.0
    %93 = vmatpush1.msra.mxu0 0.0
    %94 = vmatprep.subr.mxu0 0.0
    %95 = vmatpush1.msra.mxu0 0.0
    %96 = vmatprep.subr.mxu0 0.0
    %97 = vmatpush1.msra.mxu0 %v56
    %98 = vmatprep.subr.mxu0 0.0
    %99 = vmatpush1.msra.mxu0 %v55
    %100 = vmatprep.subr.mxu0 0.0
    %101 = vmatpush2.msra.mxu0 0.0
    %102 = vmatprep.subr.mxu0 0.0
    %103 = vmatpush2.msra.mxu0 0.0
    %104 = vmatprep.subr.mxu0 0.0
    %105 = vmatpush2.msra.mxu0 0.0
    %106 = vmatprep.subr.mxu0 0.0
    %107 = vmatpush2.msra.mxu0 0.0
    %108 = vmatprep.subr.mxu0 0.0
    %109 = vmatpush2.msra.mxu0 0.0
    %110 = vmatprep.subr.mxu0 0.0
    %111 = vmatpush2.msra.mxu0 0.0
    %112 = vmatprep.subr.mxu0 0.0
    %113 = vmatpush2.msra.mxu0 0.0
    %114 = vmatprep.subr.mxu0 0.0
    %115 = vmatpush2.msra.mxu0 0.0
    %116 = vmatprep.subr.mxu0 0.0
    %117 = vmatpush2.msra.mxu0 0.0
    %118 = vmatprep.subr.mxu0 0.0
    %119 = vmatpush2.msra.mxu0 0.0
    %120 = vmatprep.subr.mxu0 0.0
    %121 = vmatpush2.msra.mxu0 0.0
    %122 = vmatprep.subr.mxu0 0.0
    %123 = vmatpush2.msra.mxu0 0.0
    %124 = vmatprep.subr.mxu0 0.0
    %125 = vmatpush2.msra.mxu0 0.0
    %126 = vmatprep.subr.mxu0 0.0
    %127 = vmatpush2.msra.mxu0 0.0
    %128 = vmatprep.subr.mxu0 0.0
    %129 = vmatpush2.msra.mxu0 0.0
    %130 = vmatprep.subr.mxu0 0.0
    %131 = vmatpush2.msra.mxu0 0.0
    %132 = vmatprep.mubr.f32.mxu0 0.0
    %133 = vmatmul.mubr.f32.gmra.mxu0 %v66
    %v134 = vpop.f32.mrf.mxu0
    %v135 = vadd.f32 %v63, %v134
    %v136 = vpop.f32.mrf.mxu0
    %137 = vdwg.mxu0
    %vm138 = vcmask 261120
    %v139 = vsel %vm138, %v135, 0.0
    %140 = vadd.xlane.f32.xlu0 %v139
    %v141 = vpop.xlane.xlu0 %140
    %v142 = vmul.f32 %v135, %v135
    %v143 = vsel %vm138, %v142, 0.0
    %144 = vadd.xlane.f32.xlu0 %v143
    %v145 = vpop.xlane.xlu0 %144
    %v146 = vmul.f32 %v141, 0.03125
    %v147 = vmul.f32 %v145, 0.03125
    %v148 = vmul.f32 %v146, %v146
    %v149 = vsub.f32 %v147, %v148
    %v150 = vmax.f32 %v149, 0.0
    %v151 = vsub.f32 %v135, %v146
    %v152 = vadd.f32 %v150, 1e-05
    %v153 = vrsqrt.pop %v152
    %v154 = vmul.f32 %v151, %v153
    %v155 = vlaneseq
    %v156 = vshrl.u32 %v155, 7
    %v157 = vsub.s32 0, %v156
    %v158 = vrot.slane %v58, %v157
    %v159 = vmul.f32 %v154, %v158
    %v160 = vlaneseq
    %v161 = vshrl.u32 %v160, 7
    %v162 = vsub.s32 0, %v161
    %v163 = vrot.slane %v59, %v162
    %v164 = vadd.f32 %v159, %v163
    %v165 = vmax.f32 %v164, 0.0
    %v166 = vld [vmem:[#allocation5 + $0x10] sm:$0xff]
    %v167 = vld [vmem:[#allocation5 + $0x18] sm:$0xff]
    %v168 = vld [vmem:[#allocation5 + $0x20] sm:$0xff]
    %v169 = vld [vmem:[#allocation5 + $0x28] sm:$0xff]
    %v170 = vld [vmem:[#allocation7 + $0x3] sm:$0x1]
    %v171 = vld [vmem:[#allocation7 + $0x4] sm:$0x1]
    %v172 = vld [vmem:[#allocation7 + $0x5] sm:$0x1]
    %v173 = vlaneseq
    %v174 = vshrl.u32 %v173, 7
    %v175 = vsub.s32 0, %v174
    %v176 = vrot.slane %v170, %v175
    %v178 = vsel %vm138, %v165, 0
    %180 = vmatprep.subr.mxu0 0.0
    %181 = vmatpush1.msra.mxu0 0.0
    %182 = vmatprep.subr.mxu0 0.0
    %183 = vmatpush1.msra.mxu0 0.0
    %184 = vmatprep.subr.mxu0 0.0
    %185 = vmatpush1.msra.mxu0 0.0
    %186 = vmatprep.subr.mxu0 0.0
    %187 = vmatpush1.msra.mxu0 0.0
    %188 = vmatprep.subr.mxu0 0.0
    %189 = vmatpush1.msra.mxu0 0.0
    %190 = vmatprep.subr.mxu0 0.0
    %191 = vmatpush1.msra.mxu0 0.0
    %192 = vmatprep.subr.mxu0 0.0
    %193 = vmatpush1.msra.mxu0 0.0
    %194 = vmatprep.subr.mxu0 0.0
    %195 = vmatpush1.msra.mxu0 0.0
    %196 = vmatprep.subr.mxu0 0.0
    %197 = vmatpush1.msra.mxu0 0.0
    %198 = vmatprep.subr.mxu0 0.0
    %199 = vmatpush1.msra.mxu0 0.0
    %200 = vmatprep.subr.mxu0 0.0
    %201 = vmatpush1.msra.mxu0 0.0
    %202 = vmatprep.subr.mxu0 0.0
    %203 = vmatpush1.msra.mxu0 0.0
    %204 = vmatprep.subr.mxu0 0.0
    %205 = vmatpush1.msra.mxu0 %v169
    %206 = vmatprep.subr.mxu0 0.0
    %207 = vmatpush1.msra.mxu0 %v168
    %208 = vmatprep.subr.mxu0 0.0
    %209 = vmatpush1.msra.mxu0 %v167
    %210 = vmatprep.subr.mxu0 0.0
    %211 = vmatpush1.msra.mxu0 %v166
    %212 = vmatprep.subr.mxu0 0.0
    %213 = vmatpush2.msra.mxu0 0.0
    %214 = vmatprep.subr.mxu0 0.0
    %215 = vmatpush2.msra.mxu0 0.0
    %216 = vmatprep.subr.mxu0 0.0
    %217 = vmatpush2.msra.mxu0 0.0
    %218 = vmatprep.subr.mxu0 0.0
    %219 = vmatpush2.msra.mxu0 0.0
    %220 = vmatprep.subr.mxu0 0.0
    %221 = vmatpush2.msra.mxu0 0.0
    %222 = vmatprep.subr.mxu0 0.0
    %223 = vmatpush2.msra.mxu0 0.0
    %224 = vmatprep.subr.mxu0 0.0
    %225 = vmatpush2.msra.mxu0 0.0
    %226 = vmatprep.subr.mxu0 0.0
    %227 = vmatpush2.msra.mxu0 0.0
    %228 = vmatprep.subr.mxu0 0.0
    %229 = vmatpush2.msra.mxu0 0.0
    %230 = vmatprep.subr.mxu0 0.0
    %231 = vmatpush2.msra.mxu0 0.0
    %232 = vmatprep.subr.mxu0 0.0
    %233 = vmatpush2.msra.mxu0 0.0
    %234 = vmatprep.subr.mxu0 0.0
    %235 = vmatpush2.msra.mxu0 0.0
    %236 = vmatprep.subr.mxu0 0.0
    %237 = vmatpush2.msra.mxu0 0.0
    %238 = vmatprep.subr.mxu0 0.0
    %239 = vmatpush2.msra.mxu0 0.0
    %240 = vmatprep.subr.mxu0 0.0
    %241 = vmatpush2.msra.mxu0 0.0
    %242 = vmatprep.subr.mxu0 0.0
    %243 = vmatpush2.msra.mxu0 0.0
    %244 = vmatprep.mubr.f32.mxu0 0.0
    %245 = vmatmul.mubr.f32.gmra.mxu0 %v178
    %v246 = vpop.f32.mrf.mxu0
    %v247 = vadd.f32 %v176, %v246
    %v248 = vpop.f32.mrf.mxu0
    %249 = vdwg.mxu0
    %v250 = vsel %vm138, %v247, 0.0
    %251 = vadd.xlane.f32.xlu0 %v250
    %v252 = vpop.xlane.xlu0 %251
    %v253 = vmul.f32 %v247, %v247
    %v254 = vsel %vm138, %v253, 0.0
    %255 = vadd.xlane.f32.xlu0 %v254
    %v256 = vpop.xlane.xlu0 %255
    %v257 = vmul.f32 %v252, 0.03125
    %v258 = vmul.f32 %v256, 0.03125
    %v259 = vmul.f32 %v257, %v257
    %v260 = vsub.f32 %v258, %v259
    %v261 = vmax.f32 %v260, 0.0
    %v262 = vsub.f32 %v247, %v257
    %v263 = vadd.f32 %v261, 1e-05
    %v264 = vrsqrt.pop %v263
    %v265 = vmul.f32 %v262, %v264
    %v266 = vlaneseq
    %v267 = vshrl.u32 %v266, 7
    %v268 = vsub.s32 0, %v267
    %v269 = vrot.slane %v171, %v268
    %v270 = vmul.f32 %v265, %v269
    %v271 = vlaneseq
    %v272 = vshrl.u32 %v271, 7
    %v273 = vsub.s32 0, %v272
    %v274 = vrot.slane %v172, %v273
    %v275 = vadd.f32 %v270, %v274
    %v276 = vmax.f32 %v275, 0.0
    %v277 = vld [vmem:[#allocation5 + $0x30] sm:$0xff]
    %v278 = vld [vmem:[#allocation5 + $0x38] sm:$0xff]
    %v279 = vld [vmem:[#allocation5 + $0x40] sm:$0xff]
    %v280 = vld [vmem:[#allocation5 + $0x48] sm:$0xff]
    %v281 = vld [vmem:[#allocation7 + $0x6] sm:$0x1]
    %v282 = vld [vmem:[#allocation7 + $0x7] sm:$0x1]
    %v283 = vld [vmem:[#allocation7 + $0x8] sm:$0x1]
    %v284 = vlaneseq
    %v285 = vshrl.u32 %v284, 7
    %v286 = vsub.s32 0, %v285
    %v287 = vrot.slane %v281, %v286
    %v289 = vsel %vm138, %v276, 0
    %291 = vmatprep.subr.mxu0 0.0
    %292 = vmatpush1.msra.mxu0 0.0
    %293 = vmatprep.subr.mxu0 0.0
    %294 = vmatpush1.msra.mxu0 0.0
    %295 = vmatprep.subr.mxu0 0.0
    %296 = vmatpush1.msra.mxu0 0.0
    %297 = vmatprep.subr.mxu0 0.0
    %298 = vmatpush1.msra.mxu0 0.0
    %299 = vmatprep.subr.mxu0 0.0
    %300 = vmatpush1.msra.mxu0 0.0
    %301 = vmatprep.subr.mxu0 0.0
    %302 = vmatpush1.msra.mxu0 0.0
    %303 = vmatprep.subr.mxu0 0.0
    %304 = vmatpush1.msra.mxu0 0.0
    %305 = vmatprep.subr.mxu0 0.0
    %306 = vmatpush1.msra.mxu0 0.0
    %307 = vmatprep.subr.mxu0 0.0
    %308 = vmatpush1.msra.mxu0 0.0
    %309 = vmatprep.subr.mxu0 0.0
    %310 = vmatpush1.msra.mxu0 0.0
    %311 = vmatprep.subr.mxu0 0.0
    %312 = vmatpush1.msra.mxu0 0.0
    %313 = vmatprep.subr.mxu0 0.0
    %314 = vmatpush1.msra.mxu0 0.0
    %315 = vmatprep.subr.mxu0 0.0
    %316 = vmatpush1.msra.mxu0 %v280
    %317 = vmatprep.subr.mxu0 0.0
    %318 = vmatpush1.msra.mxu0 %v279
    %319 = vmatprep.subr.mxu0 0.0
    %320 = vmatpush1.msra.mxu0 %v278
    %321 = vmatprep.subr.mxu0 0.0
    %322 = vmatpush1.msra.mxu0 %v277
    %323 = vmatprep.subr.mxu0 0.0
    %324 = vmatpush2.msra.mxu0 0.0
    %325 = vmatprep.subr.mxu0 0.0
    %326 = vmatpush2.msra.mxu0 0.0
    %327 = vmatprep.subr.mxu0 0.0
    %328 = vmatpush2.msra.mxu0 0.0
    %329 = vmatprep.subr.mxu0 0.0
    %330 = vmatpush2.msra.mxu0 0.0
    %331 = vmatprep.subr.mxu0 0.0
    %332 = vmatpush2.msra.mxu0 0.0
    %333 = vmatprep.subr.mxu0 0.0
    %334 = vmatpush2.msra.mxu0 0.0
    %335 = vmatprep.subr.mxu0 0.0
    %336 = vmatpush2.msra.mxu0 0.0
    %337 = vmatprep.subr.mxu0 0.0
    %338 = vmatpush2.msra.mxu0 0.0
    %339 = vmatprep.subr.mxu0 0.0
    %340 = vmatpush2.msra.mxu0 0.0
    %341 = vmatprep.subr.mxu0 0.0
    %342 = vmatpush2.msra.mxu0 0.0
    %343 = vmatprep.subr.mxu0 0.0
    %344 = vmatpush2.msra.mxu0 0.0
    %345 = vmatprep.subr.mxu0 0.0
    %346 = vmatpush2.msra.mxu0 0.0
    %347 = vmatprep.subr.mxu0 0.0
    %348 = vmatpush2.msra.mxu0 0.0
    %349 = vmatprep.subr.mxu0 0.0
    %350 = vmatpush2.msra.mxu0 0.0
    %351 = vmatprep.subr.mxu0 0.0
    %352 = vmatpush2.msra.mxu0 0.0
    %353 = vmatprep.subr.mxu0 0.0
    %354 = vmatpush2.msra.mxu0 0.0
    %355 = vmatprep.mubr.f32.mxu0 0.0
    %356 = vmatmul.mubr.f32.gmra.mxu0 %v289
    %v357 = vpop.f32.mrf.mxu0
    %v358 = vadd.f32 %v287, %v357
    %v359 = vpop.f32.mrf.mxu0
    %360 = vdwg.mxu0
    %v361 = vsel %vm138, %v358, 0.0
    %362 = vadd.xlane.f32.xlu0 %v361
    %v363 = vpop.xlane.xlu0 %362
    %v364 = vmul.f32 %v358, %v358
    %v365 = vsel %vm138, %v364, 0.0
    %366 = vadd.xlane.f32.xlu0 %v365
    %v367 = vpop.xlane.xlu0 %366
    %v368 = vmul.f32 %v363, 0.03125
    %v369 = vmul.f32 %v367, 0.03125
    %v370 = vmul.f32 %v368, %v368
    %v371 = vsub.f32 %v369, %v370
    %v372 = vmax.f32 %v371, 0.0
    %v373 = vsub.f32 %v358, %v368
    %v374 = vadd.f32 %v372, 1e-05
    %v375 = vrsqrt.pop %v374
    %v376 = vmul.f32 %v373, %v375
    %v377 = vlaneseq
    %v378 = vshrl.u32 %v377, 7
    %v379 = vsub.s32 0, %v378
    %v380 = vrot.slane %v282, %v379
    %v381 = vmul.f32 %v376, %v380
    %v382 = vlaneseq
    %v383 = vshrl.u32 %v382, 7
    %v384 = vsub.s32 0, %v383
    %v385 = vrot.slane %v283, %v384
    %v386 = vadd.f32 %v381, %v385
    %v387 = vmax.f32 %v386, 0.0
    %v388 = vld [vmem:[#allocation5 + $0x50] sm:$0xff]
    %v389 = vld [vmem:[#allocation5 + $0x58] sm:$0xff]
    %v390 = vld [vmem:[#allocation5 + $0x60] sm:$0xff]
    %v391 = vld [vmem:[#allocation5 + $0x68] sm:$0xff]
    %v392 = vld [vmem:[#allocation7 + $0x9] sm:$0x1]
    %v393 = vlaneseq
    %v394 = vshrl.u32 %v393, 7
    %v395 = vsub.s32 0, %v394
    %v396 = vrot.slane %v392, %v395
    %v398 = vsel %vm138, %v387, 0
    %400 = vmatprep.subr.mxu0 0.0
    %401 = vmatpush1.msra.mxu0 0.0
    %402 = vmatprep.subr.mxu0 0.0
    %403 = vmatpush1.msra.mxu0 0.0
    %404 = vmatprep.subr.mxu0 0.0
    %405 = vmatpush1.msra.mxu0 0.0
    %406 = vmatprep.subr.mxu0 0.0
    %407 = vmatpush1.msra.mxu0 0.0
    %408 = vmatprep.subr.mxu0 0.0
    %409 = vmatpush1.msra.mxu0 0.0
    %410 = vmatprep.subr.mxu0 0.0
    %411 = vmatpush1.msra.mxu0 0.0
    %412 = vmatprep.subr.mxu0 0.0
    %413 = vmatpush1.msra.mxu0 0.0
    %414 = vmatprep.subr.mxu0 0.0
    %415 = vmatpush1.msra.mxu0 0.0
    %416 = vmatprep.subr.mxu0 0.0
    %417 = vmatpush1.msra.mxu0 0.0
    %418 = vmatprep.subr.mxu0 0.0
    %419 = vmatpush1.msra.mxu0 0.0
    %420 = vmatprep.subr.mxu0 0.0
    %421 = vmatpush1.msra.mxu0 0.0
    %422 = vmatprep.subr.mxu0 0.0
    %423 = vmatpush1.msra.mxu0 0.0
    %424 = vmatprep.subr.mxu0 0.0
    %425 = vmatpush1.msra.mxu0 %v391
    %426 = vmatprep.subr.mxu0 0.0
    %427 = vmatpush1.msra.mxu0 %v390
    %428 = vmatprep.subr.mxu0 0.0
    %429 = vmatpush1.msra.mxu0 %v389
    %430 = vmatprep.subr.mxu0 0.0
    %431 = vmatpush1.msra.mxu0 %v388
    %432 = vmatprep.subr.mxu0 0.0
    %433 = vmatpush2.msra.mxu0 0.0
    %434 = vmatprep.subr.mxu0 0.0
    %435 = vmatpush2.msra.mxu0 0.0
    %436 = vmatprep.subr.mxu0 0.0
    %437 = vmatpush2.msra.mxu0 0.0
    %438 = vmatprep.subr.mxu0 0.0
    %439 = vmatpush2.msra.mxu0 0.0
    %440 = vmatprep.subr.mxu0 0.0
    %441 = vmatpush2.msra.mxu0 0.0
    %442 = vmatprep.subr.mxu0 0.0
    %443 = vmatpush2.msra.mxu0 0.0
    %444 = vmatprep.subr.mxu0 0.0
    %445 = vmatpush2.msra.mxu0 0.0
    %446 = vmatprep.subr.mxu0 0.0
    %447 = vmatpush2.msra.mxu0 0.0
    %448 = vmatprep.subr.mxu0 0.0
    %449 = vmatpush2.msra.mxu0 0.0
    %450 = vmatprep.subr.mxu0 0.0
    %451 = vmatpush2.msra.mxu0 0.0
    %452 = vmatprep.subr.mxu0 0.0
    %453 = vmatpush2.msra.mxu0 0.0
    %454 = vmatprep.subr.mxu0 0.0
    %455 = vmatpush2.msra.mxu0 0.0
    %456 = vmatprep.subr.mxu0 0.0
    %457 = vmatpush2.msra.mxu0 0.0
    %458 = vmatprep.subr.mxu0 0.0
    %459 = vmatpush2.msra.mxu0 0.0
    %460 = vmatprep.subr.mxu0 0.0
    %461 = vmatpush2.msra.mxu0 0.0
    %462 = vmatprep.subr.mxu0 0.0
    %463 = vmatpush2.msra.mxu0 0.0
    %464 = vmatprep.mubr.f32.mxu0 0.0
    %465 = vmatmul.mubr.f32.gmra.mxu0 %v398
    %v466 = vpop.f32.mrf.mxu0
    %v467 = vadd.f32 %v396, %v466
    %v468 = vpop.f32.mrf.mxu0
    %469 = vdwg.mxu0
    %v470 = vtanh.pop %v467
    %471 = vst [vmem:[#allocation8] sm:$0xff] %v470
    // Predicated region
    $region26: #{actor_forward.1} parent=1 // pred_check
      _
    $region27: #{actor_forward.1} parent=1 // pred_check_branch
      %473 = sbr.rel (0) target = $region29
    $region28: #{actor_forward.1} parent=1 // pred_region
      %s475 = ssub.s32 128, 128
      %476 = vsyncadd [#allocation4], %s475
      %s478 = sshll.u32 [#allocation8], 4
      %s479 = int_to_ptr.vmem [resolvable:$true] %s478
      %481 = dma.vmem_to_hbm [thread:$0]  %s479, 128, %s3, [#allocation4]
    $region29: #{actor_forward.1} parent=1 // pred_fallthru
      _
    // Predicated region
    $region30: #{actor_forward.1} parent=1 // pred_check
      _
    $region31: #{actor_forward.1} parent=1 // pred_check_branch
      %483 = sbr.rel (0) target = $region33
    $region32: #{actor_forward.1} parent=1 // pred_region
      %484 = dma.done [#allocation4], 128
    $region33: #{actor_forward.1} parent=1 // pred_fallthru
      _
    %485 = vsyncpa [#allocation3], 1
    %486 = vsyncpa [#allocation6], 1
    %487 = vsyncpa [#allocation4], 1

</llo_original>
